<compile_context>
chip_gen: v7x
topology: tpu7x:2x2x1
jax: 0.10.0
libtpu: 0.0.40
codegen_flags: <defaults>
</compile_context>

<pallas_src>
import jax
import jax.numpy as jnp
from jax.experimental import pallas as pl
from jax.experimental.pallas import tpu as pltpu


def relu(v):
    # Graph_Conv takes the activation class as a constructor arg; nn.ReLU is
    # the typical choice for these GCN blocks.
    return jnp.maximum(v, 0.0)


def _stable_sigmoid(z):
    # One exp (EUP slot) + one divide; stable for large |z| in both directions.
    # (pl.reciprocal(..., approx=True) could move the divide to the EUP too,
    #  but the epilogue is nowhere near VPU-bound at these sizes.)
    e = jnp.exp(-jnp.abs(z))
    r = 1.0 / (1.0 + e)
    return jnp.where(z >= 0.0, r, e * r)


def _make_graph_conv_kernel(using_sc, project, act_fn, mm_dtype):
    """Build the fused kernel body for a (static) mode.

    Ref order: x, A, W_in (fused Wh|Wp or Wh), b_in, [Wg (fused), bg], out
    """

    def kernel(*refs):
        x_ref, a_ref, w_ref, b_ref = refs[:4]
        o_ref = refs[-1]
        gate_refs = refs[4:-1]

        gps, n, d_in = x_ref.shape          # graphs per step, nodes, input dim
        m = gps * n
        h_dim = o_ref.shape[-1]

        # Flatten the graph block: every dense matmul gets M = gps*N rows.
        xf = x_ref[...].reshape(m, d_in)

        # fc_hidden (and fc_1 when fused): one [M, d_in] @ [d_in, H or 2H].
        hp = jnp.dot(xf.astype(mm_dtype), w_ref[...],
                     preferred_element_type=jnp.float32) + b_ref[...]

        if using_sc != "no":
            if project:
                h_flat = hp[:, :h_dim]       # static, lane-aligned slices
                x_proj = hp[:, h_dim:]
            else:
                h_flat = hp
                x_proj = xf.astype(jnp.float32)
        else:
            h_flat = hp

        # torch.bmm(A, x_new): per-graph batched matmul.
        x_new = jnp.einsum(
            "bij,bjh->bih",
            a_ref[...].astype(mm_dtype),
            h_flat.reshape(gps, n, h_dim).astype(mm_dtype),
            preferred_element_type=jnp.float32,
        ).reshape(m, h_dim)

        if using_sc == "no":
            out = act_fn(x_new)
        elif using_sc == "sc":
            out = act_fn(x_proj + x_new)
        else:  # 'gsc'
            wg_ref, bg_ref = gate_refs
            # Fused gate: [x_proj | x_new] @ [Wg1 ; Wg2] + (bg1 + bg2), K = 2H.
            zin = jnp.concatenate([x_proj, x_new], axis=-1).astype(mm_dtype)
            z = jnp.dot(zin, wg_ref[...],
                        preferred_element_type=jnp.float32) + bg_ref[...]
            g = _stable_sigmoid(z)
            out = x_proj + g * (x_new - x_proj)   # == x_new*g + x_proj*(1-g)

        o_ref[...] = out.reshape(gps, n, h_dim).astype(o_ref.dtype)

    return kernel


def graph_conv_forward(x, adj, params, *, using_sc="gsc", act=relu,
                       matmul_dtype=None, graphs_per_step=None):
    """Pallas forward for Graph_Conv. Returns (out, A) like the module.

    matmul_dtype: dtype fed to the MXU (e.g. jnp.bfloat16 on v6e/v7x).
                  Accumulation and epilogue math stay f32.
    graphs_per_step: graphs processed per grid step (default: all of B).
    """
    B, N, d_in = x.shape
    H = params["w_hidden"].shape[1]
    project = d_in != H
    out_dtype = x.dtype
    mm_dtype = out_dtype if matmul_dtype is None else matmul_dtype

    gps = B if graphs_per_step is None else graphs_per_step
    assert B % gps == 0, "graphs_per_step must divide the batch size"
    grid = (B // gps,)

    # ---- host-side weight fusion -------------------------------------------
    wh = params["w_hidden"]
    bh = params["b_hidden"].reshape(1, H)
    if using_sc != "no" and project:
        # fc_hidden and fc_1 share the same LHS -> one [d_in, 2H] matmul.
        w_in = jnp.concatenate([wh, params["w_fc1"]], axis=1)
        b_in = jnp.concatenate([bh, params["b_fc1"].reshape(1, H)], axis=1)
    else:
        w_in, b_in = wh, bh

    operands = [x,
                adj.astype(mm_dtype),
                w_in.astype(mm_dtype),
                b_in.astype(jnp.float32)]
    in_specs = [
        # Streaming per-step graph tiles (full extent on the node/feature dims).
        pl.BlockSpec((gps, N, d_in), lambda b: (b, 0, 0)),
        pl.BlockSpec((gps, N, N), lambda b: (b, 0, 0)),
        # Weights / biases: constant block index -> fetched once and
        # VMEM-resident across all grid steps.
        pl.BlockSpec((w_in.shape[0], w_in.shape[1]), lambda b: (0, 0)),
        pl.BlockSpec((1, b_in.shape[1]), lambda b: (0, 0)),
    ]
    if using_sc == "gsc":
        # gated_X1 / gated_X2 fused: stacked [2H, H] weight, pre-summed bias.
        w_g = jnp.concatenate([params["w_g1"], params["w_g2"]], axis=0)
        b_g = (params["b_g1"] + params["b_g2"]).reshape(1, H)
        operands += [w_g.astype(mm_dtype), b_g.astype(jnp.float32)]
        in_specs += [pl.BlockSpec((2 * H, H), lambda b: (0, 0)),
                     pl.BlockSpec((1, H), lambda b: (0, 0))]

    # Advisory cost estimate so XLA schedules around the custom call sensibly.
    flops = 2 * B * N * d_in * int(w_in.shape[1]) + 2 * B * N * N * H
    transcendentals = 0
    if using_sc == "gsc":
        flops += 2 * B * N * (2 * H) * H + 6 * B * N * H
        transcendentals = B * N * H
    bytes_accessed = int(sum(int(o.size) * o.dtype.itemsize for o in operands)
                         + B * N * H * jnp.dtype(out_dtype).itemsize)

    kernel = _make_graph_conv_kernel(using_sc, project, act, mm_dtype)

    out = pl.pallas_call(
        kernel,
        out_shape=jax.ShapeDtypeStruct((B, N, H), out_dtype),
        grid_spec=pltpu.PrefetchScalarGridSpec(
            num_scalar_prefetch=0,
            grid=grid,
            in_specs=in_specs,
            out_specs=pl.BlockSpec((gps, N, H), lambda b: (b, 0, 0)),
        ),
        compiler_params=pltpu.CompilerParams(
            # Remaining batch-block axis is independent; megacore can split it
            # when grid > 1 (pltpu.CORE_PARALLEL is an option on v7x).
            dimension_semantics=("parallel",),
            # Loud compile-time failure if a future tiling outgrows v7x VMEM.
            vmem_limit_bytes=32 * 1024 * 1024,
        ),
        cost_estimate=pl.CostEstimate(
            flops=flops,
            transcendentals=transcendentals,
            bytes_accessed=bytes_accessed,
        ),
    )(*operands)
    return out, adj


def graph_conv_ref(x, adj, params, *, using_sc="gsc", act=relu):
    """Pure-JAX reference (mirrors the PyTorch forward)."""
    h = x @ params["w_hidden"] + params["b_hidden"]
    x_new = jnp.einsum("bij,bjh->bih", adj, h)
    if using_sc == "no":
        return act(x_new), adj
    d_in, H = x.shape[-1], params["w_hidden"].shape[1]
    x_proj = (x @ params["w_fc1"] + params["b_fc1"]) if d_in != H else x
    if using_sc == "sc":
        return act(x_proj + x_new), adj
    g = jax.nn.sigmoid(x_proj @ params["w_g1"] + params["b_g1"]
                       + x_new @ params["w_g2"] + params["b_g2"])
    return x_new * g + x_proj * (1.0 - g), adj


def init_params(key, input_dim, hidden_dim, using_sc="gsc", dtype=jnp.float32):
    """Deterministic synthetic init mimicking nn.Linear's U(-1/sqrt(fan_in), .)."""
    ks = jax.random.split(key, 8)

    def linear(kw, kb, fan_in, fan_out):
        lim = float(fan_in) ** -0.5
        w = jax.random.uniform(kw, (fan_in, fan_out), dtype, -lim, lim)
        b = jax.random.uniform(kb, (fan_out,), dtype, -lim, lim)
        return w, b

    params = {}
    params["w_hidden"], params["b_hidden"] = linear(ks[0], ks[1], input_dim, hidden_dim)
    if using_sc != "no" and input_dim != hidden_dim:
        params["w_fc1"], params["b_fc1"] = linear(ks[2], ks[3], input_dim, hidden_dim)
    if using_sc == "gsc":
        params["w_g1"], params["b_g1"] = linear(ks[4], ks[5], hidden_dim, hidden_dim)
        params["w_g2"], params["b_g2"] = linear(ks[6], ks[7], hidden_dim, hidden_dim)
    return params


if __name__ == "__main__":
    B, N = 2, 16          # graphs, nodes per graph
    INPUT_DIM = 32
    HIDDEN_DIM = 128      # multiple of 128 -> lane-dense output stores

    key = jax.random.PRNGKey(0)
    kx, ka, kp, kx2 = jax.random.split(key, 4)
    x = jax.random.normal(kx, (B, N, INPUT_DIM), jnp.float32)
    # Row-normalized random adjacency (graph-like; exact values irrelevant).
    adj_raw = jax.random.uniform(ka, (B, N, N), jnp.float32)
    adj = adj_raw / jnp.sum(adj_raw, axis=-1, keepdims=True)

    # TODO(synk): training-mode behavior (e.g. dropout) does not exist in this
    # module; only the eval forward pass is implemented.

    # --- f32 path: all three modes, tight tolerance --------------------------
    for mode in ("gsc", "sc", "no"):
        params = init_params(kp, INPUT_DIM, HIDDEN_DIM, using_sc=mode)
        out, a_out = graph_conv_forward(x, adj, params, using_sc=mode)
        out = jax.block_until_ready(out)
        assert out.shape == (B, N, HIDDEN_DIM)

        with jax.default_matmul_precision("highest"):
            ref, _ = graph_conv_ref(x, adj, params, using_sc=mode)
        assert jnp.allclose(out, ref, atol=1e-3, rtol=1e-3), f"mismatch in mode {mode}"
        assert jnp.array_equal(a_out, adj)

    # --- project=False path (input_dim == hidden_dim) ------------------------
    x_eq = jax.random.normal(kx2, (B, N, HIDDEN_DIM), jnp.float32)
    params_eq = init_params(kp, HIDDEN_DIM, HIDDEN_DIM, using_sc="gsc")
    out_eq, _ = graph_conv_forward(x_eq, adj, params_eq, using_sc="gsc")
    out_eq = jax.block_until_ready(out_eq)
    with jax.default_matmul_precision("highest"):
        ref_eq, _ = graph_conv_ref(x_eq, adj, params_eq, using_sc="gsc")
    assert jnp.allclose(out_eq, ref_eq, atol=1e-3, rtol=1e-3), "mismatch (project=False)"

    # --- bf16 MXU path (native fast path on v6e/v7x), looser tolerance -------
    params_g = init_params(kp, INPUT_DIM, HIDDEN_DIM, using_sc="gsc")
    out_bf, _ = graph_conv_forward(x, adj, params_g, using_sc="gsc",
                                   matmul_dtype=jnp.bfloat16)
    out_bf = jax.block_until_ready(out_bf)
    with jax.default_matmul_precision("highest"):
        ref_bf, _ = graph_conv_ref(x, adj, params_g, using_sc="gsc")
    assert jnp.allclose(out_bf, ref_bf, atol=3e-2, rtol=3e-2), "mismatch (bf16 path)"

    print("KERNEL_OK")
</pallas_src>

<mosaic_0001>
module attributes {stable_mosaic.version = 11 : i64} {
  func.func @kernel(%arg0: i32, %arg1: memref<2x16x32xf32, #tpu.memory_space<vmem>>, %arg2: memref<2x16x16xf32, #tpu.memory_space<vmem>>, %arg3: memref<32x256xf32, #tpu.memory_space<vmem>>, %arg4: memref<1x256xf32, #tpu.memory_space<vmem>>, %arg5: memref<256x128xf32, #tpu.memory_space<vmem>>, %arg6: memref<1x128xf32, #tpu.memory_space<vmem>>, %arg7: memref<2x16x128xf32, #tpu.memory_space<vmem>>) attributes {dimension_semantics = [#tpu.dimension_semantics<parallel>], iteration_bounds = array<i64: 1>, scalar_prefetch = 0 : i64, scratch_operands = 0 : i64, tpu.core_type = #tpu.core_type<tc>, window_params = [{transform_indices = @transform_0, window_bounds = array<i64: 2, 16, 32>}, {transform_indices = @transform_1, window_bounds = array<i64: 2, 16, 16>}, {pipeline_mode = #tpu.pipeline_mode<synchronous>, transform_indices = @transform_2, window_bounds = array<i64: 32, 256>}, {pipeline_mode = #tpu.pipeline_mode<synchronous>, transform_indices = @transform_3, window_bounds = array<i64: 1, 256>}, {pipeline_mode = #tpu.pipeline_mode<synchronous>, transform_indices = @transform_4, window_bounds = array<i64: 256, 128>}, {pipeline_mode = #tpu.pipeline_mode<synchronous>, transform_indices = @transform_5, window_bounds = array<i64: 1, 128>}, {transform_indices = @transform_6, window_bounds = array<i64: 2, 16, 128>}]} {
    %c0 = arith.constant 0 : index
    %c0_0 = arith.constant 0 : index
    %c0_1 = arith.constant 0 : index
    %0 = vector.load %arg1[%c0, %c0_0, %c0_1] : memref<2x16x32xf32, #tpu.memory_space<vmem>>, vector<2x16x32xf32>
    %1 = vector.shape_cast %0 : vector<2x16x32xf32> to vector<32x32xf32>
    %c0_2 = arith.constant 0 : index
    %c0_3 = arith.constant 0 : index
    %2 = vector.load %arg3[%c0_2, %c0_3] : memref<32x256xf32, #tpu.memory_space<vmem>>, vector<32x256xf32>
    %cst = arith.constant dense<0.000000e+00> : vector<32x256xf32>
    %3 = tpu.matmul %1, %2, %cst {dimension_numbers = #tpu.dot_dimension_numbers<[1], [0], [0], [1], [0, 0, 1, 1], [], []>} : vector<32x32xf32>, vector<32x256xf32>, vector<32x256xf32> -> vector<32x256xf32>
    %c0_4 = arith.constant 0 : index
    %c0_5 = arith.constant 0 : index
    %4 = vector.load %arg4[%c0_4, %c0_5] : memref<1x256xf32, #tpu.memory_space<vmem>>, vector<1x256xf32>
    %5 = vector.broadcast %4 : vector<1x256xf32> to vector<32x256xf32>
    %6 = arith.addf %3, %5 : vector<32x256xf32>
    %7 = vector.extract_strided_slice %6 {offsets = [0, 0], sizes = [32, 128], strides = [1, 1]} : vector<32x256xf32> to vector<32x128xf32>
    %8 = vector.extract_strided_slice %6 {offsets = [0, 128], sizes = [32, 128], strides = [1, 1]} : vector<32x256xf32> to vector<32x128xf32>
    %c0_6 = arith.constant 0 : index
    %c0_7 = arith.constant 0 : index
    %c0_8 = arith.constant 0 : index
    %9 = vector.load %arg2[%c0_6, %c0_7, %c0_8] : memref<2x16x16xf32, #tpu.memory_space<vmem>>, vector<2x16x16xf32>
    %10 = vector.shape_cast %7 : vector<32x128xf32> to vector<2x16x128xf32>
    "tpu.trace_start"() <{level = 10 : i32, message = "bij,bjh->bih"}> : () -> ()
    %cst_9 = arith.constant dense<0.000000e+00> : vector<2x16x128xf32>
    %11 = tpu.matmul %9, %10, %cst_9 {dimension_numbers = #tpu.dot_dimension_numbers<[2], [1], [1], [2], [0, 0, 0, 1, 1, 2], [0], [0]>} : vector<2x16x16xf32>, vector<2x16x128xf32>, vector<2x16x128xf32> -> vector<2x16x128xf32>
    "tpu.trace_stop"() : () -> ()
    %12 = vector.shape_cast %11 : vector<2x16x128xf32> to vector<32x128xf32>
    %13 = tpu.concatenate %8, %12 in 1 : vector<32x128xf32>, vector<32x128xf32> -> vector<32x256xf32>
    %c0_10 = arith.constant 0 : index
    %c0_11 = arith.constant 0 : index
    %14 = vector.load %arg5[%c0_10, %c0_11] : memref<256x128xf32, #tpu.memory_space<vmem>>, vector<256x128xf32>
    %cst_12 = arith.constant dense<0.000000e+00> : vector<32x128xf32>
    %15 = tpu.matmul %13, %14, %cst_12 {dimension_numbers = #tpu.dot_dimension_numbers<[1], [0], [0], [1], [0, 0, 1, 1], [], []>} : vector<32x256xf32>, vector<256x128xf32>, vector<32x128xf32> -> vector<32x128xf32>
    %c0_13 = arith.constant 0 : index
    %c0_14 = arith.constant 0 : index
    %16 = vector.load %arg6[%c0_13, %c0_14] : memref<1x128xf32, #tpu.memory_space<vmem>>, vector<1x128xf32>
    %17 = vector.broadcast %16 : vector<1x128xf32> to vector<32x128xf32>
    %18 = arith.addf %15, %17 : vector<32x128xf32>
    %19 = math.absf %18 : vector<32x128xf32>
    %cst_15 = arith.constant 0.000000e+00 : f32
    %20 = vector.broadcast %cst_15 : f32 to vector<32x128xf32>
    %21 = arith.subf %20, %19 : vector<32x128xf32>
    %22 = math.exp %21 : vector<32x128xf32>
    %cst_16 = arith.constant 1.000000e+00 : f32
    %23 = vector.broadcast %cst_16 : f32 to vector<32x128xf32>
    %24 = arith.addf %23, %22 : vector<32x128xf32>
    %cst_17 = arith.constant 1.000000e+00 : f32
    %25 = vector.broadcast %cst_17 : f32 to vector<32x128xf32>
    %26 = arith.divf %25, %24 : vector<32x128xf32>
    %cst_18 = arith.constant 0.000000e+00 : f32
    %27 = vector.broadcast %cst_18 : f32 to vector<32x128xf32>
    %28 = arith.cmpf oge, %18, %27 : vector<32x128xf32>
    %29 = arith.mulf %22, %26 : vector<32x128xf32>
    %30 = arith.select %28, %26, %29 : vector<32x128xi1>, vector<32x128xf32>
    %31 = arith.subf %12, %8 : vector<32x128xf32>
    %32 = arith.mulf %30, %31 : vector<32x128xf32>
    %33 = arith.addf %8, %32 : vector<32x128xf32>
    %34 = vector.shape_cast %33 : vector<32x128xf32> to vector<2x16x128xf32>
    %c0_19 = arith.constant 0 : index
    %c0_20 = arith.constant 0 : index
    %c0_21 = arith.constant 0 : index
    %35 = vector.load %arg7[%c0_19, %c0_20, %c0_21] : memref<2x16x128xf32, #tpu.memory_space<vmem>>, vector<2x16x128xf32>
    tpu.vector_store %arg7[%c0_19, %c0_20, %c0_21], %34 {strides = array<i32>} : memref<2x16x128xf32, #tpu.memory_space<vmem>>, vector<2x16x128xf32>,
    return
  }
  func.func @transform_0(%arg0: i32) -> (i32, i32, i32) {
    %c0_i32 = arith.constant 0 : i32
    %c0_i32_0 = arith.constant 0 : i32
    %c0_i32_1 = arith.constant 0 : i32
    return %arg0, %c0_i32, %c0_i32_0 : i32, i32, i32
  }
  func.func @transform_1(%arg0: i32) -> (i32, i32, i32) {
    %c0_i32 = arith.constant 0 : i32
    %c0_i32_0 = arith.constant 0 : i32
    %c0_i32_1 = arith.constant 0 : i32
    return %arg0, %c0_i32, %c0_i32_0 : i32, i32, i32
  }
  func.func @transform_2(%arg0: i32) -> (i32, i32) {
    %c0_i32 = arith.constant 0 : i32
    %c0_i32_0 = arith.constant 0 : i32
    %c0_i32_1 = arith.constant 0 : i32
    return %c0_i32, %c0_i32_0 : i32, i32
  }
  func.func @transform_3(%arg0: i32) -> (i32, i32) {
    %c0_i32 = arith.constant 0 : i32
    %c0_i32_0 = arith.constant 0 : i32
    %c0_i32_1 = arith.constant 0 : i32
    return %c0_i32, %c0_i32_0 : i32, i32
  }
  func.func @transform_4(%arg0: i32) -> (i32, i32) {
    %c0_i32 = arith.constant 0 : i32
    %c0_i32_0 = arith.constant 0 : i32
    %c0_i32_1 = arith.constant 0 : i32
    return %c0_i32, %c0_i32_0 : i32, i32
  }
  func.func @transform_5(%arg0: i32) -> (i32, i32) {
    %c0_i32 = arith.constant 0 : i32
    %c0_i32_0 = arith.constant 0 : i32
    %c0_i32_1 = arith.constant 0 : i32
    return %c0_i32, %c0_i32_0 : i32, i32
  }
  func.func @transform_6(%arg0: i32) -> (i32, i32, i32) {
    %c0_i32 = arith.constant 0 : i32
    %c0_i32_0 = arith.constant 0 : i32
    %c0_i32_1 = arith.constant 0 : i32
    return %arg0, %c0_i32, %c0_i32_0 : i32, i32, i32
  }
}

</mosaic_0001>

<llo_original>
// kernel: tpu_custom_call.1
$region0: #{tpu_custom_call.1}
  #allocation0 [shape = 'u32[]', space=smem, size = 0x4, offset = 0x4, fixed_abs, tag = 'smem constant byte address 0x4 - core index']
  #allocation1 [shape = 'u32[144,128]{1,0:T(1,128)}', space=vmem, size = 0x12000, scoped, tag = 'internal scratch']
  %s0 = inlined_call_operand.hbm [shape: f32[2,16,32], index: 0, kind: input, shape index: {}]
  %s1 = inlined_call_operand.hbm [shape: f32[2,16,16], index: 1, kind: input, shape index: {}]
  %s2 = inlined_call_operand.hbm [shape: f32[32,256], index: 2, kind: input, shape index: {}]
  %s3 = inlined_call_operand.vmem [shape: f32[1,256], index: 3, kind: input, shape index: {}]
  %s4 = inlined_call_operand.hbm [shape: f32[256,128], index: 4, kind: input, shape index: {}]
  %s5 = inlined_call_operand.vmem [shape: f32[1,128], index: 5, kind: input, shape index: {}]
  %s6 = inlined_call_operand.hbm [shape: f32[2,16,128], index: 6, kind: output, shape index: {}]
  %s7 = sld [smem:[#allocation0]]
  $region50: #{tpu_custom_call.1} parent=0
    _
  %s9 = ssub.s32 1, %s7
  %s10 = scalar_select 0, %s9, %s7
  $region1: #{tpu_custom_call.1} parent=0
    #allocation2 [shape = 'u8[16384]{0}', space=vmem, size = 0x4000, scoped, tag = 'input window, operand 0, single buffered']
    #allocation3 [shape = 's32[1]{0}', space=sflag, size = 0x4, scoped, tag = 'scoped memory for tpu_custom_call.1']
    #allocation4 [shape = 's32[1]{0}', space=sflag, size = 0x4, scoped, tag = 'scoped memory for tpu_custom_call.1']
    #allocation5 [shape = 'u8[16384]{0}', space=vmem, size = 0x4000, scoped, tag = 'input window, operand 1, single buffered']
    #allocation6 [shape = 's32[1]{0}', space=sflag, size = 0x4, scoped, tag = 'scoped memory for tpu_custom_call.1']
    #allocation7 [shape = 'u8[32768]{0}', space=vmem, size = 0x8000, scoped, tag = 'input window, operand 2, single buffered']
    #allocation8 [shape = 'u8[131072]{0}', space=vmem, size = 0x20000, scoped, tag = 'input window, operand 4, single buffered']
    #allocation9 [shape = 's32[1]{0}', space=sflag, size = 0x4, scoped, tag = 'scoped memory for tpu_custom_call.1']
    #allocation10 [shape = 'u8[16384]{0}', space=vmem, size = 0x4000, scoped, tag = 'output window, operand 0, single buffered']
    %11 = vsyncpa [#allocation3], 0
    %12 = vsyncpa [#allocation6], 0
    %13 = vsyncpa [#allocation9], 0
    %14 = vsyncpa [#allocation4], 0
    // Predicated region
    $region2: #{tpu_custom_call.1} parent=1 // pred_check
      _
    $region3: #{tpu_custom_call.1} parent=1 // pred_check_branch
      %16 = sbr.rel (0) target = $region5
    $region4: #{tpu_custom_call.1} parent=1 // pred_region
      %s18 = ssub.s32 512, 512
      %19 = vsyncadd [#allocation3], %s18
      %s20 = sshll.u32 [#allocation2], 4
      %s21 = int_to_ptr.vmem [resolvable:$true] %s20
      %26 = dma.hbm_to_vmem [thread:$0]  %s0, 512, %s21, [#allocation3], 128, 128, 8
    $region5: #{tpu_custom_call.1} parent=1 // pred_fallthru
      _
    // Predicated region
    $region6: #{tpu_custom_call.1} parent=1 // pred_check
      _
    $region7: #{tpu_custom_call.1} parent=1 // pred_check_branch
      %28 = sbr.rel (0) target = $region9
    $region8: #{tpu_custom_call.1} parent=1 // pred_region
      %s30 = ssub.s32 512, 512
      %31 = vsyncadd [#allocation6], %s30
      %s32 = sshll.u32 [#allocation5], 4
      %s33 = int_to_ptr.vmem [resolvable:$true] %s32
      %38 = dma.hbm_to_vmem [thread:$0]  %s1, 512, %s33, [#allocation6], 128, 128, 8
    $region9: #{tpu_custom_call.1} parent=1 // pred_fallthru
      _
    // Predicated region
    $region10: #{tpu_custom_call.1} parent=1 // pred_check
      _
    $region11: #{tpu_custom_call.1} parent=1 // pred_check_branch
      %40 = sbr.rel (0) target = $region13
    $region12: #{tpu_custom_call.1} parent=1 // pred_region
      %s42 = ssub.s32 1024, 1024
      %43 = vsyncadd [#allocation6], %s42
      %s44 = sshll.u32 [#allocation7], 4
      %s45 = int_to_ptr.vmem [resolvable:$true] %s44
      %50 = dma.hbm_to_vmem [thread:$0]  %s2, 1024, %s45, [#allocation6], 256, 256, 16
    $region13: #{tpu_custom_call.1} parent=1 // pred_fallthru
      _
    // Predicated region
    $region14: #{tpu_custom_call.1} parent=1 // pred_check
      _
    $region15: #{tpu_custom_call.1} parent=1 // pred_check_branch
      %52 = sbr.rel (0) target = $region17
    $region16: #{tpu_custom_call.1} parent=1 // pred_region
      _
    $region17: #{tpu_custom_call.1} parent=1 // pred_fallthru
      _
    // Predicated region
    $region18: #{tpu_custom_call.1} parent=1 // pred_check
      _
    $region19: #{tpu_custom_call.1} parent=1 // pred_check_branch
      %54 = sbr.rel (0) target = $region21
    $region20: #{tpu_custom_call.1} parent=1 // pred_region
      %s56 = ssub.s32 4096, 4096
      %57 = vsyncadd [#allocation9], %s56
      %s58 = sshll.u32 [#allocation8], 4
      %s59 = int_to_ptr.vmem [resolvable:$true] %s58
      %64 = dma.hbm_to_vmem [thread:$0]  %s4, 4096, %s59, [#allocation9], 128, 128, 8
    $region21: #{tpu_custom_call.1} parent=1 // pred_fallthru
      _
    // Predicated region
    $region22: #{tpu_custom_call.1} parent=1 // pred_check
      _
    $region23: #{tpu_custom_call.1} parent=1 // pred_check_branch
      %66 = sbr.rel (0) target = $region25
    $region24: #{tpu_custom_call.1} parent=1 // pred_region
      _
    $region25: #{tpu_custom_call.1} parent=1 // pred_fallthru
      _
    // Predicated region
    $region26: #{tpu_custom_call.1} parent=1 // pred_check
      _
    $region27: #{tpu_custom_call.1} parent=1 // pred_check_branch
      %68 = sbr.rel (0) target = $region29
    $region28: #{tpu_custom_call.1} parent=1 // pred_region
      %69 = dma.done [#allocation3], 512
    $region29: #{tpu_custom_call.1} parent=1 // pred_fallthru
      _
    // Predicated region
    $region30: #{tpu_custom_call.1} parent=1 // pred_check
      _
    $region31: #{tpu_custom_call.1} parent=1 // pred_check_branch
      %71 = sbr.rel (0) target = $region33
    $region32: #{tpu_custom_call.1} parent=1 // pred_region
      %72 = dma.done [#allocation6], 512
    $region33: #{tpu_custom_call.1} parent=1 // pred_fallthru
      _
    // Predicated region
    $region34: #{tpu_custom_call.1} parent=1 // pred_check
      _
    $region35: #{tpu_custom_call.1} parent=1 // pred_check_branch
      %74 = sbr.rel (0) target = $region37
    $region36: #{tpu_custom_call.1} parent=1 // pred_region
      %75 = dma.done [#allocation6], 1024
    $region37: #{tpu_custom_call.1} parent=1 // pred_fallthru
      _
    // Predicated region
    $region38: #{tpu_custom_call.1} parent=1 // pred_check
      _
    $region39: #{tpu_custom_call.1} parent=1 // pred_check_branch
      %77 = sbr.rel (0) target = $region41
    $region40: #{tpu_custom_call.1} parent=1 // pred_region
      %78 = dma.done [#allocation9], 4096
    $region41: #{tpu_custom_call.1} parent=1 // pred_fallthru
      _
    %v79 = vld [vmem:[#allocation2] sm:$0xff]
    %v80 = vld [vmem:[#allocation2 + $0x8] sm:$0xff]
    %v81 = vld [vmem:[#allocation2 + $0x10] sm:$0xff]
    %v82 = vld [vmem:[#allocation2 + $0x18] sm:$0xff]
    %v83 = vld [vmem:[#allocation7] sm:$0xff]
    %v84 = vld [vmem:[#allocation7 + $0x8] sm:$0xff]
    %v85 = vld [vmem:[#allocation7 + $0x10] sm:$0xff]
    %v86 = vld [vmem:[#allocation7 + $0x18] sm:$0xff]
    %v87 = vld [vmem:[#allocation7 + $0x20] sm:$0xff]
    %v88 = vld [vmem:[#allocation7 + $0x28] sm:$0xff]
    %v89 = vld [vmem:[#allocation7 + $0x30] sm:$0xff]
    %v90 = vld [vmem:[#allocation7 + $0x38] sm:$0xff]
    %v91 = vld [vmem:[%s3] sm:$0x3]
    %v93 = vlaneseq
    %v94 = vshrl.u32 %v93, 7
    %v95 = vsub.s32 0, %v94
    %v96 = vrot.slane %v91, %v95
    %v97 = vlaneseq
    %v98 = vshrl.u32 %v97, 7
    %v99 = vsub.s32 1, %v98
    %v100 = vrot.slane %v91, %v99
    %vm103 = vcmask 261120
    %v105 = vsel %vm103, %v79, 0
    %v108 = vsel %vm103, %v80, 0
    %v111 = vsel %vm103, %v81, 0
    %v114 = vsel %vm103, %v82, 0
    %116 = vmatprep.subr.mxu0 %v84
    %117 = vmatpush1.msra.mxu0 %v83
    %118 = vmatprep.subr.mxu0 %v86
    %119 = vmatpush1.msra.mxu0 %v85
    %120 = vmatprep.subr.mxu0 %v88
    %121 = vmatpush1.msra.mxu0 %v87
    %122 = vmatprep.subr.mxu0 %v90
    %123 = vmatpush1.msra.mxu0 %v89
    %124 = vmatprep.subr.mxu0 0.0
    %125 = vmatpush1.msra.mxu0 0.0
    %126 = vmatprep.subr.mxu0 0.0
    %127 = vmatpush1.msra.mxu0 0.0
    %128 = vmatprep.subr.mxu0 0.0
    %129 = vmatpush1.msra.mxu0 0.0
    %130 = vmatprep.subr.mxu0 0.0
    %131 = vmatpush1.msra.mxu0 0.0
    %132 = vmatprep.subr.mxu0 0.0
    %133 = vmatpush1.msra.mxu0 0.0
    %134 = vmatprep.subr.mxu0 0.0
    %135 = vmatpush1.msra.mxu0 0.0
    %136 = vmatprep.subr.mxu0 0.0
    %137 = vmatpush1.msra.mxu0 0.0
    %138 = vmatprep.subr.mxu0 0.0
    %139 = vmatpush1.msra.mxu0 0.0
    %140 = vmatprep.subr.mxu0 0.0
    %141 = vmatpush1.msra.mxu0 0.0
    %142 = vmatprep.subr.mxu0 0.0
    %143 = vmatpush1.msra.mxu0 0.0
    %144 = vmatprep.subr.mxu0 0.0
    %145 = vmatpush1.msra.mxu0 0.0
    %146 = vmatprep.subr.mxu0 0.0
    %147 = vmatpush1.msra.mxu0 0.0
    %148 = vmatprep.subr.mxu0 0.0
    %149 = vmatpush1.msra.mxu0 0.0
    %150 = vmatprep.subr.mxu0 0.0
    %151 = vmatpush1.msra.mxu0 0.0
    %152 = vmatprep.subr.mxu0 0.0
    %153 = vmatpush1.msra.mxu0 0.0
    %154 = vmatprep.subr.mxu0 0.0
    %155 = vmatpush1.msra.mxu0 0.0
    %156 = vmatprep.subr.mxu0 0.0
    %157 = vmatpush1.msra.mxu0 0.0
    %158 = vmatprep.subr.mxu0 0.0
    %159 = vmatpush1.msra.mxu0 0.0
    %160 = vmatprep.subr.mxu0 0.0
    %161 = vmatpush1.msra.mxu0 0.0
    %162 = vmatprep.subr.mxu0 0.0
    %163 = vmatpush1.msra.mxu0 0.0
    %164 = vmatprep.subr.mxu0 0.0
    %165 = vmatpush1.msra.mxu0 0.0
    %166 = vmatprep.subr.mxu0 0.0
    %167 = vmatpush1.msra.mxu0 0.0
    %168 = vmatprep.subr.mxu0 0.0
    %169 = vmatpush1.msra.mxu0 0.0
    %170 = vmatprep.subr.mxu0 0.0
    %171 = vmatpush1.msra.mxu0 0.0
    %172 = vmatprep.subr.mxu0 0.0
    %173 = vmatpush1.msra.mxu0 0.0
    %174 = vmatprep.subr.mxu0 0.0
    %175 = vmatpush1.msra.mxu0 0.0
    %176 = vmatprep.subr.mxu0 0.0
    %177 = vmatpush1.msra.mxu0 0.0
    %178 = vmatprep.subr.mxu0 0.0
    %179 = vmatpush1.msra.mxu0 0.0
    %180 = vmatprep.mubr.f32.mxu0 0.0
    %181 = vmatmul.mubr.f32.gmra.mrb[0].mxu0 %v105
    %v182 = vpop.f32.mrb[0].mxu0
    %v183 = vadd.f32 %v96, %v182
    %v184 = vpop.f32.mrb[0].mxu0
    %v185 = vadd.f32 %v100, %v184
    %186 = vmatprep.mubr.f32.mxu0 0.0
    %187 = vmatmul.mubr.f32.gmra.mrb[0].mxu0 %v108
    %v188 = vpop.f32.mrb[0].mxu0
    %v189 = vadd.f32 %v96, %v188
    %v190 = vpop.f32.mrb[0].mxu0
    %v191 = vadd.f32 %v100, %v190
    %192 = vmatprep.mubr.f32.mxu0 0.0
    %193 = vmatmul.mubr.f32.gmra.mrb[0].mxu0 %v111
    %v194 = vpop.f32.mrb[0].mxu0
    %v195 = vadd.f32 %v96, %v194
    %v196 = vpop.f32.mrb[0].mxu0
    %v197 = vadd.f32 %v100, %v196
    %198 = vmatprep.mubr.f32.mxu0 0.0
    %199 = vmatmul.mubr.f32.gmra.mrb[0].mxu0 %v114
    %v200 = vpop.f32.mrb[0].mxu0
    %v201 = vadd.f32 %v96, %v200
    %v202 = vpop.f32.mrb[0].mxu0
    %v203 = vadd.f32 %v100, %v202
    %204 = vdwg.mxu0
    %v205 = vld [vmem:[#allocation5] sm:$0xff]
    %v206 = vld [vmem:[#allocation5 + $0x8] sm:$0xff]
    %v207 = vld [vmem:[#allocation5 + $0x10] sm:$0xff]
    %v208 = vld [vmem:[#allocation5 + $0x18] sm:$0xff]
    %vm209 = vcmask 130048
    %v211 = vsel %vm209, %v205, 0
    %v214 = vsel %vm209, %v206, 0
    %216 = vmatprep.subr.mxu0 0.0
    %217 = vmatpush1.msra.mxu0 %v183
    %218 = vmatprep.subr.mxu0 0.0
    %219 = vmatpush1.msra.mxu0 %v189
    %220 = vmatprep.subr.mxu0 0.0
    %221 = vmatpush1.msra.mxu0 0.0
    %222 = vmatprep.subr.mxu0 0.0
    %223 = vmatpush1.msra.mxu0 0.0
    %224 = vmatprep.subr.mxu0 0.0
    %225 = vmatpush1.msra.mxu0 0.0
    %226 = vmatprep.subr.mxu0 0.0
    %227 = vmatpush1.msra.mxu0 0.0
    %228 = vmatprep.subr.mxu0 0.0
    %229 = vmatpush1.msra.mxu0 0.0
    %230 = vmatprep.subr.mxu0 0.0
    %231 = vmatpush1.msra.mxu0 0.0
    %232 = vmatprep.subr.mxu0 0.0
    %233 = vmatpush1.msra.mxu0 0.0
    %234 = vmatprep.subr.mxu0 0.0
    %235 = vmatpush1.msra.mxu0 0.0
    %236 = vmatprep.subr.mxu0 0.0
    %237 = vmatpush1.msra.mxu0 0.0
    %238 = vmatprep.subr.mxu0 0.0
    %239 = vmatpush1.msra.mxu0 0.0
    %240 = vmatprep.subr.mxu0 0.0
    %241 = vmatpush1.msra.mxu0 0.0
    %242 = vmatprep.subr.mxu0 0.0
    %243 = vmatpush1.msra.mxu0 0.0
    %244 = vmatprep.subr.mxu0 0.0
    %245 = vmatpush1.msra.mxu0 0.0
    %246 = vmatprep.subr.mxu0 0.0
    %247 = vmatpush1.msra.mxu0 0.0
    %248 = vmatprep.subr.mxu0 0.0
    %249 = vmatpush1.msra.mxu0 0.0
    %250 = vmatprep.subr.mxu0 0.0
    %251 = vmatpush1.msra.mxu0 0.0
    %252 = vmatprep.subr.mxu0 0.0
    %253 = vmatpush1.msra.mxu0 0.0
    %254 = vmatprep.subr.mxu0 0.0
    %255 = vmatpush1.msra.mxu0 0.0
    %256 = vmatprep.subr.mxu0 0.0
    %257 = vmatpush1.msra.mxu0 0.0
    %258 = vmatprep.subr.mxu0 0.0
    %259 = vmatpush1.msra.mxu0 0.0
    %260 = vmatprep.subr.mxu0 0.0
    %261 = vmatpush1.msra.mxu0 0.0
    %262 = vmatprep.subr.mxu0 0.0
    %263 = vmatpush1.msra.mxu0 0.0
    %264 = vmatprep.subr.mxu0 0.0
    %265 = vmatpush1.msra.mxu0 0.0
    %266 = vmatprep.subr.mxu0 0.0
    %267 = vmatpush1.msra.mxu0 0.0
    %268 = vmatprep.subr.mxu0 0.0
    %269 = vmatpush1.msra.mxu0 0.0
    %270 = vmatprep.subr.mxu0 0.0
    %271 = vmatpush1.msra.mxu0 0.0
    %272 = vmatprep.subr.mxu0 0.0
    %273 = vmatpush1.msra.mxu0 0.0
    %274 = vmatprep.subr.mxu0 0.0
    %275 = vmatpush1.msra.mxu0 0.0
    %276 = vmatprep.subr.mxu0 0.0
    %277 = vmatpush1.msra.mxu0 0.0
    %278 = vmatprep.subr.mxu0 0.0
    %279 = vmatpush1.msra.mxu0 0.0
    %280 = vmatprep.mubr.f32.mxu0 0.0
    %281 = vmatmul.mubr.f32.gmra.mrb[0].mxu0 %v211
    %v282 = vpop.f32.mrb[0].mxu0
    %v283 = vadd.f32 0.0, %v282
    %v284 = vpop.f32.mrb[0].mxu0
    %285 = vmatprep.mubr.f32.mxu0 0.0
    %286 = vmatmul.mubr.f32.gmra.mrb[0].mxu0 %v214
    %v287 = vpop.f32.mrb[0].mxu0
    %v288 = vadd.f32 0.0, %v287
    %v289 = vpop.f32.mrb[0].mxu0
    %290 = vdwg.mxu0
    %v292 = vsel %vm209, %v207, 0
    %v295 = vsel %vm209, %v208, 0
    %297 = vmatprep.subr.mxu0 0.0
    %298 = vmatpush1.msra.mxu0 %v195
    %299 = vmatprep.subr.mxu0 0.0
    %300 = vmatpush1.msra.mxu0 %v201
    %301 = vmatprep.subr.mxu0 0.0
    %302 = vmatpush1.msra.mxu0 0.0
    %303 = vmatprep.subr.mxu0 0.0
    %304 = vmatpush1.msra.mxu0 0.0
    %305 = vmatprep.subr.mxu0 0.0
    %306 = vmatpush1.msra.mxu0 0.0
    %307 = vmatprep.subr.mxu0 0.0
    %308 = vmatpush1.msra.mxu0 0.0
    %309 = vmatprep.subr.mxu0 0.0
    %310 = vmatpush1.msra.mxu0 0.0
    %311 = vmatprep.subr.mxu0 0.0
    %312 = vmatpush1.msra.mxu0 0.0
    %313 = vmatprep.subr.mxu0 0.0
    %314 = vmatpush1.msra.mxu0 0.0
    %315 = vmatprep.subr.mxu0 0.0
    %316 = vmatpush1.msra.mxu0 0.0
    %317 = vmatprep.subr.mxu0 0.0
    %318 = vmatpush1.msra.mxu0 0.0
    %319 = vmatprep.subr.mxu0 0.0
    %320 = vmatpush1.msra.mxu0 0.0
    %321 = vmatprep.subr.mxu0 0.0
    %322 = vmatpush1.msra.mxu0 0.0
    %323 = vmatprep.subr.mxu0 0.0
    %324 = vmatpush1.msra.mxu0 0.0
    %325 = vmatprep.subr.mxu0 0.0
    %326 = vmatpush1.msra.mxu0 0.0
    %327 = vmatprep.subr.mxu0 0.0
    %328 = vmatpush1.msra.mxu0 0.0
    %329 = vmatprep.subr.mxu0 0.0
    %330 = vmatpush1.msra.mxu0 0.0
    %331 = vmatprep.subr.mxu0 0.0
    %332 = vmatpush1.msra.mxu0 0.0
    %333 = vmatprep.subr.mxu0 0.0
    %334 = vmatpush1.msra.mxu0 0.0
    %335 = vmatprep.subr.mxu0 0.0
    %336 = vmatpush1.msra.mxu0 0.0
    %337 = vmatprep.subr.mxu0 0.0
    %338 = vmatpush1.msra.mxu0 0.0
    %339 = vmatprep.subr.mxu0 0.0
    %340 = vmatpush1.msra.mxu0 0.0
    %341 = vmatprep.subr.mxu0 0.0
    %342 = vmatpush1.msra.mxu0 0.0
    %343 = vmatprep.subr.mxu0 0.0
    %344 = vmatpush1.msra.mxu0 0.0
    %345 = vmatprep.subr.mxu0 0.0
    %346 = vmatpush1.msra.mxu0 0.0
    %347 = vmatprep.subr.mxu0 0.0
    %348 = vmatpush1.msra.mxu0 0.0
    %349 = vmatprep.subr.mxu0 0.0
    %350 = vmatpush1.msra.mxu0 0.0
    %351 = vmatprep.subr.mxu0 0.0
    %352 = vmatpush1.msra.mxu0 0.0
    %353 = vmatprep.subr.mxu0 0.0
    %354 = vmatpush1.msra.mxu0 0.0
    %355 = vmatprep.subr.mxu0 0.0
    %356 = vmatpush1.msra.mxu0 0.0
    %357 = vmatprep.subr.mxu0 0.0
    %358 = vmatpush1.msra.mxu0 0.0
    %359 = vmatprep.subr.mxu0 0.0
    %360 = vmatpush1.msra.mxu0 0.0
    %361 = vmatprep.mubr.f32.mxu0 0.0
    %362 = vmatmul.mubr.f32.gmra.mrb[0].mxu0 %v292
    %v363 = vpop.f32.mrb[0].mxu0
    %v364 = vadd.f32 0.0, %v363
    %v365 = vpop.f32.mrb[0].mxu0
    %366 = vmatprep.mubr.f32.mxu0 0.0
    %367 = vmatmul.mubr.f32.gmra.mrb[0].mxu0 %v295
    %v368 = vpop.f32.mrb[0].mxu0
    %v369 = vadd.f32 0.0, %v368
    %v370 = vpop.f32.mrb[0].mxu0
    %371 = vdwg.mxu0
    %v372 = vld [vmem:[#allocation8] sm:$0xff]
    %v373 = vld [vmem:[#allocation8 + $0x8] sm:$0xff]
    %v374 = vld [vmem:[#allocation8 + $0x10] sm:$0xff]
    %v375 = vld [vmem:[#allocation8 + $0x18] sm:$0xff]
    %v376 = vld [vmem:[#allocation8 + $0x20] sm:$0xff]
    %v377 = vld [vmem:[#allocation8 + $0x28] sm:$0xff]
    %v378 = vld [vmem:[#allocation8 + $0x30] sm:$0xff]
    %v379 = vld [vmem:[#allocation8 + $0x38] sm:$0xff]
    %v380 = vld [vmem:[#allocation8 + $0x40] sm:$0xff]
    %v381 = vld [vmem:[#allocation8 + $0x48] sm:$0xff]
    %v382 = vld [vmem:[#allocation8 + $0x50] sm:$0xff]
    %v383 = vld [vmem:[#allocation8 + $0x58] sm:$0xff]
    %v384 = vld [vmem:[#allocation8 + $0x60] sm:$0xff]
    %v385 = vld [vmem:[#allocation8 + $0x68] sm:$0xff]
    %v386 = vld [vmem:[#allocation8 + $0x70] sm:$0xff]
    %v387 = vld [vmem:[#allocation8 + $0x78] sm:$0xff]
    %v388 = vld [vmem:[#allocation8 + $0x80] sm:$0xff]
    %v389 = vld [vmem:[#allocation8 + $0x88] sm:$0xff]
    %v390 = vld [vmem:[#allocation8 + $0x90] sm:$0xff]
    %v391 = vld [vmem:[#allocation8 + $0x98] sm:$0xff]
    %v392 = vld [vmem:[#allocation8 + $0xa0] sm:$0xff]
    %v393 = vld [vmem:[#allocation8 + $0xa8] sm:$0xff]
    %v394 = vld [vmem:[#allocation8 + $0xb0] sm:$0xff]
    %v395 = vld [vmem:[#allocation8 + $0xb8] sm:$0xff]
    %v396 = vld [vmem:[#allocation8 + $0xc0] sm:$0xff]
    %v397 = vld [vmem:[#allocation8 + $0xc8] sm:$0xff]
    %v398 = vld [vmem:[#allocation8 + $0xd0] sm:$0xff]
    %v399 = vld [vmem:[#allocation8 + $0xd8] sm:$0xff]
    %v400 = vld [vmem:[#allocation8 + $0xe0] sm:$0xff]
    %v401 = vld [vmem:[#allocation8 + $0xe8] sm:$0xff]
    %v402 = vld [vmem:[#allocation8 + $0xf0] sm:$0xff]
    %v403 = vld [vmem:[#allocation8 + $0xf8] sm:$0xff]
    %v404 = vld [vmem:[%s5] sm:$0x1]
    %v406 = vlaneseq
    %v407 = vshrl.u32 %v406, 7
    %v408 = vsub.s32 0, %v407
    %v409 = vrot.slane %v404, %v408
    %411 = vmatprep.subr.mxu0 0.0
    %412 = vmatpush1.msra.mxu0 %v372
    %413 = vmatprep.subr.mxu0 0.0
    %414 = vmatpush1.msra.mxu0 %v373
    %415 = vmatprep.subr.mxu0 0.0
    %416 = vmatpush1.msra.mxu0 %v374
    %417 = vmatprep.subr.mxu0 0.0
    %418 = vmatpush1.msra.mxu0 %v375
    %419 = vmatprep.subr.mxu0 0.0
    %420 = vmatpush1.msra.mxu0 %v376
    %421 = vmatprep.subr.mxu0 0.0
    %422 = vmatpush1.msra.mxu0 %v377
    %423 = vmatprep.subr.mxu0 0.0
    %424 = vmatpush1.msra.mxu0 %v378
    %425 = vmatprep.subr.mxu0 0.0
    %426 = vmatpush1.msra.mxu0 %v379
    %427 = vmatprep.subr.mxu0 0.0
    %428 = vmatpush1.msra.mxu0 %v380
    %429 = vmatprep.subr.mxu0 0.0
    %430 = vmatpush1.msra.mxu0 %v381
    %431 = vmatprep.subr.mxu0 0.0
    %432 = vmatpush1.msra.mxu0 %v382
    %433 = vmatprep.subr.mxu0 0.0
    %434 = vmatpush1.msra.mxu0 %v383
    %435 = vmatprep.subr.mxu0 0.0
    %436 = vmatpush1.msra.mxu0 %v384
    %437 = vmatprep.subr.mxu0 0.0
    %438 = vmatpush1.msra.mxu0 %v385
    %439 = vmatprep.subr.mxu0 0.0
    %440 = vmatpush1.msra.mxu0 %v386
    %441 = vmatprep.subr.mxu0 0.0
    %442 = vmatpush1.msra.mxu0 %v387
    %443 = vmatprep.subr.mxu0 0.0
    %444 = vmatpush1.msra.mxu0 %v388
    %445 = vmatprep.subr.mxu0 0.0
    %446 = vmatpush1.msra.mxu0 %v389
    %447 = vmatprep.subr.mxu0 0.0
    %448 = vmatpush1.msra.mxu0 %v390
    %449 = vmatprep.subr.mxu0 0.0
    %450 = vmatpush1.msra.mxu0 %v391
    %451 = vmatprep.subr.mxu0 0.0
    %452 = vmatpush1.msra.mxu0 %v392
    %453 = vmatprep.subr.mxu0 0.0
    %454 = vmatpush1.msra.mxu0 %v393
    %455 = vmatprep.subr.mxu0 0.0
    %456 = vmatpush1.msra.mxu0 %v394
    %457 = vmatprep.subr.mxu0 0.0
    %458 = vmatpush1.msra.mxu0 %v395
    %459 = vmatprep.subr.mxu0 0.0
    %460 = vmatpush1.msra.mxu0 %v396
    %461 = vmatprep.subr.mxu0 0.0
    %462 = vmatpush1.msra.mxu0 %v397
    %463 = vmatprep.subr.mxu0 0.0
    %464 = vmatpush1.msra.mxu0 %v398
    %465 = vmatprep.subr.mxu0 0.0
    %466 = vmatpush1.msra.mxu0 %v399
    %467 = vmatprep.subr.mxu0 0.0
    %468 = vmatpush1.msra.mxu0 %v400
    %469 = vmatprep.subr.mxu0 0.0
    %470 = vmatpush1.msra.mxu0 %v401
    %471 = vmatprep.subr.mxu0 0.0
    %472 = vmatpush1.msra.mxu0 %v402
    %473 = vmatprep.subr.mxu0 0.0
    %474 = vmatpush1.msra.mxu0 %v403
    %475 = vmatprep.mubr.f32.mxu0 %v283
    %476 = vmatmul.mubr.f32.gmra.mrb[0].mxu0 %v185
    %v477 = vpop.f32.mrb[0].mxu0
    %v478 = vadd.f32 %v409, %v477
    %v479 = vpop.f32.mrb[0].mxu0
    %480 = vmatprep.mubr.f32.mxu0 %v288
    %481 = vmatmul.mubr.f32.gmra.mrb[0].mxu0 %v191
    %v482 = vpop.f32.mrb[0].mxu0
    %v483 = vadd.f32 %v409, %v482
    %v484 = vpop.f32.mrb[0].mxu0
    %485 = vmatprep.mubr.f32.mxu0 %v364
    %486 = vmatmul.mubr.f32.gmra.mrb[0].mxu0 %v197
    %v487 = vpop.f32.mrb[0].mxu0
    %v488 = vadd.f32 %v409, %v487
    %v489 = vpop.f32.mrb[0].mxu0
    %490 = vmatprep.mubr.f32.mxu0 %v369
    %491 = vmatmul.mubr.f32.gmra.mrb[0].mxu0 %v203
    %v492 = vpop.f32.mrb[0].mxu0
    %v493 = vadd.f32 %v409, %v492
    %v494 = vpop.f32.mrb[0].mxu0
    %495 = vdwg.mxu0
    %v496 = vand.u32 2147483647, %v478
    %v497 = vand.u32 2147483647, %v483
    %v498 = vand.u32 2147483647, %v488
    %v499 = vand.u32 2147483647, %v493
    %v500 = vsub.f32 0.0, %v496
    %v501 = vsub.f32 0.0, %v497
    %v502 = vsub.f32 0.0, %v498
    %v503 = vsub.f32 0.0, %v499
    %v504 = vmul.f32 %v500, 1.442695
    %v505 = vpow.pop %v504
    %v506 = vmul.f32 %v501, 1.442695
    %v507 = vpow.pop %v506
    %v508 = vmul.f32 %v502, 1.442695
    %v509 = vpow.pop %v508
    %v510 = vmul.f32 %v503, 1.442695
    %v511 = vpow.pop %v510
    %v512 = vadd.f32 %v505, 1.0
    %v513 = vadd.f32 %v507, 1.0
    %v514 = vadd.f32 %v509, 1.0
    %v515 = vadd.f32 %v511, 1.0
    %v516 = vrcp.pop %v512
    %v517 = vmul.f32 1.0, %v516
    %v518 = vrcp.pop %v513
    %v519 = vmul.f32 1.0, %v518
    %v520 = vrcp.pop %v514
    %v521 = vmul.f32 1.0, %v520
    %v522 = vrcp.pop %v515
    %v523 = vmul.f32 1.0, %v522
    %vm524 = vcmp.ge.f32.partialorder %v478, 0.0
    %vm525 = vcmp.ge.f32.partialorder %v483, 0.0
    %vm526 = vcmp.ge.f32.partialorder %v488, 0.0
    %vm527 = vcmp.ge.f32.partialorder %v493, 0.0
    %v528 = vmul.f32 %v505, %v517
    %v529 = vmul.f32 %v507, %v519
    %v530 = vmul.f32 %v509, %v521
    %v531 = vmul.f32 %v511, %v523
    %v532 = vsel %vm524, %v517, %v528
    %v533 = vsel %vm525, %v519, %v529
    %v534 = vsel %vm526, %v521, %v530
    %v535 = vsel %vm527, %v523, %v531
    %v536 = vsub.f32 %v283, %v185
    %v537 = vsub.f32 %v288, %v191
    %v538 = vsub.f32 %v364, %v197
    %v539 = vsub.f32 %v369, %v203
    %v540 = vmul.f32 %v532, %v536
    %v541 = vmul.f32 %v533, %v537
    %v542 = vmul.f32 %v534, %v538
    %v543 = vmul.f32 %v535, %v539
    %v544 = vadd.f32 %v185, %v540
    %v545 = vadd.f32 %v191, %v541
    %v546 = vadd.f32 %v197, %v542
    %v547 = vadd.f32 %v203, %v543
    %548 = vst [vmem:[#allocation10] sm:$0xff] %v544
    %549 = vst [vmem:[#allocation10 + $0x8] sm:$0xff] %v545
    %550 = vst [vmem:[#allocation10 + $0x10] sm:$0xff] %v546
    %551 = vst [vmem:[#allocation10 + $0x18] sm:$0xff] %v547
    // Predicated region
    $region42: #{tpu_custom_call.1} parent=1 // pred_check
      _
    $region43: #{tpu_custom_call.1} parent=1 // pred_check_branch
      %553 = sbr.rel (0) target = $region45
    $region44: #{tpu_custom_call.1} parent=1 // pred_region
      %s555 = ssub.s32 512, 512
      %556 = vsyncadd [#allocation4], %s555
      %s557 = sshll.u32 [#allocation10], 4
      %s558 = int_to_ptr.vmem [resolvable:$true] %s557
      %563 = dma.vmem_to_hbm [thread:$0]  %s558, 512, %s6, [#allocation4], 128, 128, 8
    $region45: #{tpu_custom_call.1} parent=1 // pred_fallthru
      _
    // Predicated region
    $region46: #{tpu_custom_call.1} parent=1 // pred_check
      _
    $region47: #{tpu_custom_call.1} parent=1 // pred_check_branch
      %565 = sbr.rel (0) target = $region49
    $region48: #{tpu_custom_call.1} parent=1 // pred_region
      %566 = dma.done [#allocation4], 512
    $region49: #{tpu_custom_call.1} parent=1 // pred_fallthru
      _
    %567 = vsyncpa [#allocation3], 1
    %568 = vsyncpa [#allocation6], 1
    %569 = vsyncpa [#allocation9], 1
    %570 = vsyncpa [#allocation4], 1

</llo_original>
